<compile_context>
chip_gen: v5e
topology: v5e:2x2
jax: 0.10.0
libtpu: 0.0.40
codegen_flags: <defaults>
</compile_context>

<pallas_src>
import functools

import jax
import jax.numpy as jnp
import numpy as np
from jax.experimental import pallas as pl
from jax.experimental.pallas import tpu as pltpu


# ----------------------------------------------------------------------------
# Pallas kernel: out_tile = (A_tile @ B) + bias   (bf16 inputs, f32 accumulate)
# ----------------------------------------------------------------------------
def _patch_proj_kernel(a_ref, b_ref, bias_ref, o_ref):
    acc = jnp.dot(a_ref[...], b_ref[...], preferred_element_type=jnp.float32)
    o_ref[...] = (acc + bias_ref[...]).astype(o_ref.dtype)


def _choose_tm(m_pad, cap=512):
    """Largest M-tile (multiple of 8, <= cap).

    Per-step VMEM for cap=512, K<=1024, E<=1024 stays well under the scoped
    limit even double-buffered, and bigger tiles amortize the ~0.35us/step
    grid overhead.
    """
    return m_pad if m_pad <= cap else cap


def patch_proj_matmul(a_bf, b_bf, bias):
    """a:(M,K) bf16, b:(K,E) bf16, bias:(E,) f32 -> (M,E) f32 via a tiled Pallas matmul."""
    M, K = a_bf.shape
    K2, E = b_bf.shape
    assert K == K2

    # Round M up to a multiple of 8 (sublane), then to a multiple of the tile.
    m8 = ((M + 7) // 8) * 8
    TM = _choose_tm(m8)
    M_pad = pl.cdiv(m8, TM) * TM
    if M_pad != M:
        a_bf = jnp.pad(a_bf, ((0, M_pad - M), (0, 0)))

    bias2 = bias.reshape(1, E).astype(jnp.float32)

    grid = (M_pad // TM,)
    cost = pl.CostEstimate(
        flops=2 * M_pad * K * E,
        transcendentals=0,
        bytes_accessed=M_pad * K * 2 + K * E * 2 + E * 4 + M_pad * E * 4,
    )

    out = pl.pallas_call(
        _patch_proj_kernel,
        out_shape=jax.ShapeDtypeStruct((M_pad, E), jnp.float32),
        grid=grid,
        in_specs=[
            pl.BlockSpec((TM, K), lambda i: (i, 0)),   # A: streamed over M
            pl.BlockSpec((K, E), lambda i: (0, 0)),    # B: VMEM-resident
            pl.BlockSpec((1, E), lambda i: (0, 0)),    # bias: VMEM-resident
        ],
        out_specs=pl.BlockSpec((TM, E), lambda i: (i, 0)),
        compiler_params=pltpu.CompilerParams(
            dimension_semantics=("parallel",),          # shard M across TCs on v7x
            vmem_limit_bytes=64 * 1024 * 1024,
        ),
        cost_estimate=cost,
    )(a_bf, b_bf, bias2)

    return out[:M] if M_pad != M else out


# ----------------------------------------------------------------------------
# PatchEmbedding forward
# ----------------------------------------------------------------------------
def patch_embedding_forward(params, x_nchw, patch_size):
    """x: (N, C, H, W) -> (N, n_patches, embed_dim), matching
    Conv2d(k=stride=patch_size) -> flatten(2) -> transpose(1, 2)."""
    w = params["proj_w"]          # (embed_dim, C, ps, ps)
    bias = params["proj_b"]       # (embed_dim,)
    E, C, ps, _ = w.shape
    N, C2, H, W = x_nchw.shape
    assert C == C2 and H % ps == 0 and W % ps == 0 and ps == patch_size
    Hp, Wp = H // ps, W // ps

    # Patch extraction ("im2col"): (N,C,H,W) -> (N,Hp,Wp,C,ps,ps) -> (N*Hp*Wp, C*ps*ps).
    # Pure layout shuffle done in bf16 (halves HBM traffic for the shuffle);
    # ordering matches Conv2d weight layout (C, kh, kw).
    x = x_nchw.astype(jnp.bfloat16)
    patches = x.reshape(N, C, Hp, ps, Wp, ps)
    patches = jnp.transpose(patches, (0, 2, 4, 1, 3, 5))
    a_bf = patches.reshape(N * Hp * Wp, C * ps * ps)

    # Weight: (E, C, ps, ps) -> (C*ps*ps, E), bf16 for the MXU.
    b_bf = jnp.transpose(w.reshape(E, C * ps * ps), (1, 0)).astype(jnp.bfloat16)

    out = patch_proj_matmul(a_bf, b_bf, bias)            # (N*Hp*Wp, E) f32
    return out.reshape(N, Hp * Wp, E)


def make_patch_embedding_params(key, img_size=32, patch_size=8, in_channels=3, embed_dim=256):
    kw, kb = jax.random.split(key)
    fan_in = in_channels * patch_size * patch_size
    w = jax.random.normal(kw, (embed_dim, in_channels, patch_size, patch_size),
                          jnp.float32) / np.sqrt(fan_in)
    b = 0.01 * jax.random.normal(kb, (embed_dim,), jnp.float32)
    return {"proj_w": w, "proj_b": b}


# ----------------------------------------------------------------------------
if __name__ == "__main__":
    IMG, PS, CIN, EMB = 32, 8, 3, 256   # module defaults
    BATCH = 2

    key = jax.random.PRNGKey(0)
    pkey, xkey = jax.random.split(key)
    params = make_patch_embedding_params(pkey, IMG, PS, CIN, EMB)
    x = jax.random.normal(xkey, (BATCH, CIN, IMG, IMG), jnp.float32)

    fwd = jax.jit(functools.partial(patch_embedding_forward, patch_size=PS))
    out = fwd(params, x)
    out = jax.block_until_ready(out)

    n_patches = (IMG // PS) ** 2
    assert out.shape == (BATCH, n_patches, EMB), out.shape
    assert bool(jnp.all(jnp.isfinite(out)))

    # Reference check (f32 conv-as-matmul); bf16 MXU path => loose tolerance.
    patches = jnp.transpose(x.reshape(BATCH, CIN, IMG // PS, PS, IMG // PS, PS),
                            (0, 2, 4, 1, 3, 5)).reshape(BATCH * n_patches, CIN * PS * PS)
    ref = (patches @ params["proj_w"].reshape(EMB, -1).T + params["proj_b"]).reshape(
        BATCH, n_patches, EMB)
    assert bool(jnp.allclose(out, ref, rtol=5e-2, atol=5e-2))

    print("KERNEL_OK")
</pallas_src>

<mosaic_0001>
module attributes {stable_mosaic.version = 11 : i64} {
  func.func @_patch_proj_kernel(%arg0: i32, %arg1: memref<32x192xbf16, #tpu.memory_space<vmem>>, %arg2: memref<192x256xbf16, #tpu.memory_space<vmem>>, %arg3: memref<1x256xf32, #tpu.memory_space<vmem>>, %arg4: memref<32x256xf32, #tpu.memory_space<vmem>>) attributes {dimension_semantics = [#tpu.dimension_semantics<parallel>], iteration_bounds = array<i64: 1>, scalar_prefetch = 0 : i64, scratch_operands = 0 : i64, tpu.core_type = #tpu.core_type<tc>, window_params = [{transform_indices = @transform_0, window_bounds = array<i64: 32, 192>}, {pipeline_mode = #tpu.pipeline_mode<synchronous>, transform_indices = @transform_1, window_bounds = array<i64: 192, 256>}, {pipeline_mode = #tpu.pipeline_mode<synchronous>, transform_indices = @transform_2, window_bounds = array<i64: 1, 256>}, {transform_indices = @transform_3, window_bounds = array<i64: 32, 256>}]} {
    %c0 = arith.constant 0 : index
    %c0_0 = arith.constant 0 : index
    %0 = vector.load %arg1[%c0, %c0_0] : memref<32x192xbf16, #tpu.memory_space<vmem>>, vector<32x192xbf16>
    %c0_1 = arith.constant 0 : index
    %c0_2 = arith.constant 0 : index
    %1 = vector.load %arg2[%c0_1, %c0_2] : memref<192x256xbf16, #tpu.memory_space<vmem>>, vector<192x256xbf16>
    %cst = arith.constant dense<0.000000e+00> : vector<32x256xf32>
    %2 = tpu.matmul %0, %1, %cst {dimension_numbers = #tpu.dot_dimension_numbers<[1], [0], [0], [1], [0, 0, 1, 1], [], []>} : vector<32x192xbf16>, vector<192x256xbf16>, vector<32x256xf32> -> vector<32x256xf32>
    %c0_3 = arith.constant 0 : index
    %c0_4 = arith.constant 0 : index
    %3 = vector.load %arg3[%c0_3, %c0_4] : memref<1x256xf32, #tpu.memory_space<vmem>>, vector<1x256xf32>
    %4 = vector.broadcast %3 : vector<1x256xf32> to vector<32x256xf32>
    %5 = arith.addf %2, %4 : vector<32x256xf32>
    %c0_5 = arith.constant 0 : index
    %c0_6 = arith.constant 0 : index
    %6 = vector.load %arg4[%c0_5, %c0_6] : memref<32x256xf32, #tpu.memory_space<vmem>>, vector<32x256xf32>
    tpu.vector_store %arg4[%c0_5, %c0_6], %5 {strides = array<i32>} : memref<32x256xf32, #tpu.memory_space<vmem>>, vector<32x256xf32>,
    return
  }
  func.func @transform_0(%arg0: i32) -> (i32, i32) {
    %c0_i32 = arith.constant 0 : i32
    %c0_i32_0 = arith.constant 0 : i32
    return %arg0, %c0_i32 : i32, i32
  }
  func.func @transform_1(%arg0: i32) -> (i32, i32) {
    %c0_i32 = arith.constant 0 : i32
    %c0_i32_0 = arith.constant 0 : i32
    %c0_i32_1 = arith.constant 0 : i32
    return %c0_i32, %c0_i32_0 : i32, i32
  }
  func.func @transform_2(%arg0: i32) -> (i32, i32) {
    %c0_i32 = arith.constant 0 : i32
    %c0_i32_0 = arith.constant 0 : i32
    %c0_i32_1 = arith.constant 0 : i32
    return %c0_i32, %c0_i32_0 : i32, i32
  }
  func.func @transform_3(%arg0: i32) -> (i32, i32) {
    %c0_i32 = arith.constant 0 : i32
    %c0_i32_0 = arith.constant 0 : i32
    return %arg0, %c0_i32 : i32, i32
  }
}

</mosaic_0001>

<llo_original>
// kernel: patch_embedding_forward.1
$region0: #{patch_embedding_forward.1}
  #allocation0 [shape = 'u32[]', space=smem, size = 0x4, offset = 0x4, fixed_abs, tag = 'smem constant byte address 0x4 - core index']
  #allocation1 [shape = 'u32[72,128]{1,0:T(1,128)}', space=vmem, size = 0x9000, scoped, tag = 'internal scratch']
  %s0 = inlined_call_operand.vmem [shape: bf16[32,192], index: 0, kind: input, shape index: {}]
  %s1 = inlined_call_operand.vmem [shape: bf16[192,256], index: 1, kind: input, shape index: {}]
  %s2 = inlined_call_operand.vmem [shape: f32[1,256], index: 2, kind: input, shape index: {}]
  %s3 = inlined_call_operand.hbm [shape: f32[32,256], index: 3, kind: output, shape index: {}]
  %s4 = sld [smem:[#allocation0]]
  $region22: #{patch_embedding_forward.1} parent=0
    _
  %s6 = ssub.s32 1, %s4
  %s7 = scalar_select 0, %s6, %s4
  $region1: #{patch_embedding_forward.1} parent=0
    #allocation2 [shape = 'u8[32768]{0}', space=vmem, size = 0x8000, scoped, tag = 'output window, operand 0, single buffered']
    #allocation3 [shape = 's32[1]{0}', space=sflag, size = 0x4, scoped, tag = 'scoped memory for patch_embedding_forward.1']
    %8 = vsyncpa [#allocation3], 0
    // Predicated region
    $region2: #{patch_embedding_forward.1} parent=1 // pred_check
      _
    $region3: #{patch_embedding_forward.1} parent=1 // pred_check_branch
      %10 = sbr.rel (0) target = $region5
    $region4: #{patch_embedding_forward.1} parent=1 // pred_region
      _
    $region5: #{patch_embedding_forward.1} parent=1 // pred_fallthru
      _
    // Predicated region
    $region6: #{patch_embedding_forward.1} parent=1 // pred_check
      _
    $region7: #{patch_embedding_forward.1} parent=1 // pred_check_branch
      %12 = sbr.rel (0) target = $region9
    $region8: #{patch_embedding_forward.1} parent=1 // pred_region
      _
    $region9: #{patch_embedding_forward.1} parent=1 // pred_fallthru
      _
    // Predicated region
    $region10: #{patch_embedding_forward.1} parent=1 // pred_check
      _
    $region11: #{patch_embedding_forward.1} parent=1 // pred_check_branch
      %14 = sbr.rel (0) target = $region13
    $region12: #{patch_embedding_forward.1} parent=1 // pred_region
      _
    $region13: #{patch_embedding_forward.1} parent=1 // pred_fallthru
      _
    %v16 = vld [vmem:[%s0] sm:$0xff]
    %v17 = vld [vmem:[%s0 + $0x8] sm:$0xff]
    %v18 = vld [vmem:[%s0 + $0x10] sm:$0xff]
    %v19 = vld [vmem:[%s0 + $0x18] sm:$0xff]
    %v20 = vld [vmem:[%s1] sm:$0xff]
    %v21 = vld [vmem:[%s1 + $0x8] sm:$0xff]
    %v22 = vld [vmem:[%s1 + $0x10] sm:$0xff]
    %v23 = vld [vmem:[%s1 + $0x18] sm:$0xff]
    %v24 = vld [vmem:[%s1 + $0x20] sm:$0xff]
    %v25 = vld [vmem:[%s1 + $0x28] sm:$0xff]
    %v26 = vld [vmem:[%s1 + $0x30] sm:$0xff]
    %v27 = vld [vmem:[%s1 + $0x38] sm:$0xff]
    %v28 = vld [vmem:[%s1 + $0x40] sm:$0xff]
    %v29 = vld [vmem:[%s1 + $0x48] sm:$0xff]
    %v30 = vld [vmem:[%s1 + $0x50] sm:$0xff]
    %v31 = vld [vmem:[%s1 + $0x58] sm:$0xff]
    %v32 = vld [vmem:[%s1 + $0x60] sm:$0xff]
    %v33 = vld [vmem:[%s1 + $0x68] sm:$0xff]
    %v34 = vld [vmem:[%s1 + $0x70] sm:$0xff]
    %v35 = vld [vmem:[%s1 + $0x78] sm:$0xff]
    %v36 = vld [vmem:[%s1 + $0x80] sm:$0xff]
    %v37 = vld [vmem:[%s1 + $0x88] sm:$0xff]
    %v38 = vld [vmem:[%s1 + $0x90] sm:$0xff]
    %v39 = vld [vmem:[%s1 + $0x98] sm:$0xff]
    %v40 = vld [vmem:[%s1 + $0xa0] sm:$0xff]
    %v41 = vld [vmem:[%s1 + $0xa8] sm:$0xff]
    %v42 = vld [vmem:[%s1 + $0xb0] sm:$0xff]
    %v43 = vld [vmem:[%s1 + $0xb8] sm:$0xff]
    %v44 = vld [vmem:[%s2] sm:$0x3]
    %v46 = vperm.slane %v44, 0
    %v47 = vperm.slane %v44, 1
    %v54 = vunpack.c.l.b16 %v16
    %v55 = vunpack.c.h.b16 %v16
    %v56 = vunpack.c.l.b16 %v17
    %v57 = vunpack.c.h.b16 %v17
    %v58 = vunpack.c.l.b16 %v18
    %v59 = vunpack.c.h.b16 %v18
    %v60 = vunpack.c.l.b16 %v19
    %v61 = vunpack.c.h.b16 %v19
    %v62 = vpack.c.b16 %v56, %v54
    %v63 = vpack.c.b16 %v57, %v55
    %v64 = vpack.c.b16 %v60, %v58
    %v65 = vpack.c.b16 %v61, %v59
    %v92 = vunpack.c.l.b16 %v20
    %v93 = vunpack.c.h.b16 %v20
    %v94 = vunpack.c.l.b16 %v21
    %v95 = vunpack.c.h.b16 %v21
    %v96 = vunpack.c.l.b16 %v22
    %v97 = vunpack.c.h.b16 %v22
    %v98 = vunpack.c.l.b16 %v23
    %v99 = vunpack.c.h.b16 %v23
    %v100 = vunpack.c.l.b16 %v24
    %v101 = vunpack.c.h.b16 %v24
    %v102 = vunpack.c.l.b16 %v25
    %v103 = vunpack.c.h.b16 %v25
    %v104 = vunpack.c.l.b16 %v26
    %v105 = vunpack.c.h.b16 %v26
    %v106 = vunpack.c.l.b16 %v27
    %v107 = vunpack.c.h.b16 %v27
    %v108 = vunpack.c.l.b16 %v28
    %v109 = vunpack.c.h.b16 %v28
    %v110 = vunpack.c.l.b16 %v29
    %v111 = vunpack.c.h.b16 %v29
    %v112 = vunpack.c.l.b16 %v30
    %v113 = vunpack.c.h.b16 %v30
    %v114 = vunpack.c.l.b16 %v31
    %v115 = vunpack.c.h.b16 %v31
    %v116 = vunpack.c.l.b16 %v32
    %v117 = vunpack.c.h.b16 %v32
    %v118 = vunpack.c.l.b16 %v33
    %v119 = vunpack.c.h.b16 %v33
    %v120 = vunpack.c.l.b16 %v34
    %v121 = vunpack.c.h.b16 %v34
    %v122 = vunpack.c.l.b16 %v35
    %v123 = vunpack.c.h.b16 %v35
    %v124 = vunpack.c.l.b16 %v36
    %v125 = vunpack.c.h.b16 %v36
    %v126 = vunpack.c.l.b16 %v37
    %v127 = vunpack.c.h.b16 %v37
    %v128 = vunpack.c.l.b16 %v38
    %v129 = vunpack.c.h.b16 %v38
    %v130 = vunpack.c.l.b16 %v39
    %v131 = vunpack.c.h.b16 %v39
    %v132 = vunpack.c.l.b16 %v40
    %v133 = vunpack.c.h.b16 %v40
    %v134 = vunpack.c.l.b16 %v41
    %v135 = vunpack.c.h.b16 %v41
    %v136 = vunpack.c.l.b16 %v42
    %v137 = vunpack.c.h.b16 %v42
    %v138 = vunpack.c.l.b16 %v43
    %v139 = vunpack.c.h.b16 %v43
    %v140 = vpack.c.b16 %v94, %v92
    %v141 = vpack.c.b16 %v95, %v93
    %v142 = vpack.c.b16 %v98, %v96
    %v143 = vpack.c.b16 %v99, %v97
    %v144 = vpack.c.b16 %v102, %v100
    %v145 = vpack.c.b16 %v103, %v101
    %v146 = vpack.c.b16 %v106, %v104
    %v147 = vpack.c.b16 %v107, %v105
    %v148 = vpack.c.b16 %v110, %v108
    %v149 = vpack.c.b16 %v111, %v109
    %v150 = vpack.c.b16 %v114, %v112
    %v151 = vpack.c.b16 %v115, %v113
    %v152 = vpack.c.b16 %v118, %v116
    %v153 = vpack.c.b16 %v119, %v117
    %v154 = vpack.c.b16 %v122, %v120
    %v155 = vpack.c.b16 %v123, %v121
    %v156 = vpack.c.b16 %v126, %v124
    %v157 = vpack.c.b16 %v127, %v125
    %v158 = vpack.c.b16 %v130, %v128
    %v159 = vpack.c.b16 %v131, %v129
    %v160 = vpack.c.b16 %v134, %v132
    %v161 = vpack.c.b16 %v135, %v133
    %v162 = vpack.c.b16 %v138, %v136
    %v163 = vpack.c.b16 %v139, %v137
    %vm188 = vcmask 523264
    %v190 = vsel %vm188, %v63, 0
    %v193 = vsel %vm188, %v65, 0
    %195 = vmatpush.bf16.msra.mxu0 %v154
    %196 = vmatpush.bf16.msra.mxu0 %v152
    %197 = vmatpush.bf16.msra.mxu0 %v150
    %198 = vmatpush.bf16.msra.mxu0 %v148
    %199 = vmatpush.bf16.msra.mxu0 %v146
    %200 = vmatpush.bf16.msra.mxu0 %v144
    %201 = vmatpush.bf16.msra.mxu0 %v142
    %202 = vmatpush.bf16.msra.mxu0 %v140
    %203 = vmatmul.bf16.gmra.mxu0 %v62
    %v204 = vpop.f32.mrf.mxu0
    %v205 = vadd.f32 %v46, %v204
    %v206 = vpop.f32.mrf.mxu0
    %v207 = vadd.f32 %v46, %v206
    %208 = vmatmul.bf16.gmra.mxu0 %v64
    %v209 = vpop.f32.mrf.mxu0
    %v210 = vadd.f32 %v46, %v209
    %v211 = vpop.f32.mrf.mxu0
    %v212 = vadd.f32 %v46, %v211
    %213 = vdwg.mxu0
    %214 = vmatpush.bf16.msra.mxu0 0
    %215 = vmatpush.bf16.msra.mxu0 0
    %216 = vmatpush.bf16.msra.mxu0 0
    %217 = vmatpush.bf16.msra.mxu0 0
    %218 = vmatpush.bf16.msra.mxu0 %v162
    %219 = vmatpush.bf16.msra.mxu0 %v160
    %220 = vmatpush.bf16.msra.mxu0 %v158
    %221 = vmatpush.bf16.msra.mxu0 %v156
    %222 = vmatmul.bf16.gmra.mxu0 %v190
    %v223 = vpop.f32.mrf.mxu0
    %v224 = vadd.f32 %v205, %v223
    %v225 = vpop.f32.mrf.mxu0
    %v226 = vadd.f32 %v207, %v225
    %227 = vmatmul.bf16.gmra.mxu0 %v193
    %v228 = vpop.f32.mrf.mxu0
    %v229 = vadd.f32 %v210, %v228
    %v230 = vpop.f32.mrf.mxu0
    %v231 = vadd.f32 %v212, %v230
    %232 = vdwg.mxu0
    %233 = vmatpush.bf16.msra.mxu0 %v155
    %234 = vmatpush.bf16.msra.mxu0 %v153
    %235 = vmatpush.bf16.msra.mxu0 %v151
    %236 = vmatpush.bf16.msra.mxu0 %v149
    %237 = vmatpush.bf16.msra.mxu0 %v147
    %238 = vmatpush.bf16.msra.mxu0 %v145
    %239 = vmatpush.bf16.msra.mxu0 %v143
    %240 = vmatpush.bf16.msra.mxu0 %v141
    %241 = vmatmul.bf16.gmra.mxu0 %v62
    %v242 = vpop.f32.mrf.mxu0
    %v243 = vadd.f32 %v47, %v242
    %v244 = vpop.f32.mrf.mxu0
    %v245 = vadd.f32 %v47, %v244
    %246 = vmatmul.bf16.gmra.mxu0 %v64
    %v247 = vpop.f32.mrf.mxu0
    %v248 = vadd.f32 %v47, %v247
    %v249 = vpop.f32.mrf.mxu0
    %v250 = vadd.f32 %v47, %v249
    %251 = vdwg.mxu0
    %252 = vmatpush.bf16.msra.mxu0 0
    %253 = vmatpush.bf16.msra.mxu0 0
    %254 = vmatpush.bf16.msra.mxu0 0
    %255 = vmatpush.bf16.msra.mxu0 0
    %256 = vmatpush.bf16.msra.mxu0 %v163
    %257 = vmatpush.bf16.msra.mxu0 %v161
    %258 = vmatpush.bf16.msra.mxu0 %v159
    %259 = vmatpush.bf16.msra.mxu0 %v157
    %260 = vmatmul.bf16.gmra.mxu0 %v190
    %v261 = vpop.f32.mrf.mxu0
    %v262 = vadd.f32 %v243, %v261
    %v263 = vpop.f32.mrf.mxu0
    %v264 = vadd.f32 %v245, %v263
    %265 = vmatmul.bf16.gmra.mxu0 %v193
    %v266 = vpop.f32.mrf.mxu0
    %v267 = vadd.f32 %v248, %v266
    %v268 = vpop.f32.mrf.mxu0
    %v269 = vadd.f32 %v250, %v268
    %270 = vdwg.mxu0
    %271 = vst [vmem:[#allocation2] sm:$0xff] %v224
    %272 = vst [vmem:[#allocation2 + $0x8] sm:$0xff] %v262
    %273 = vst [vmem:[#allocation2 + $0x10] sm:$0xff] %v226
    %274 = vst [vmem:[#allocation2 + $0x18] sm:$0xff] %v264
    %275 = vst [vmem:[#allocation2 + $0x20] sm:$0xff] %v229
    %276 = vst [vmem:[#allocation2 + $0x28] sm:$0xff] %v267
    %277 = vst [vmem:[#allocation2 + $0x30] sm:$0xff] %v231
    %278 = vst [vmem:[#allocation2 + $0x38] sm:$0xff] %v269
    // Predicated region
    $region14: #{patch_embedding_forward.1} parent=1 // pred_check
      _
    $region15: #{patch_embedding_forward.1} parent=1 // pred_check_branch
      %280 = sbr.rel (0) target = $region17
    $region16: #{patch_embedding_forward.1} parent=1 // pred_region
      %282 = vsyncadd [#allocation3], 0
      %s283 = sshll.u32 [#allocation2], 4
      %s284 = int_to_ptr.vmem [resolvable:$true] %s283
      %s285 = sshll.u32 %s3, 4
      %s286 = int_to_ptr.hbm [resolvable:$true] %s285
      %291 = dma.vmem_to_hbm [thread:$0]  %s284, 1024, %s286, [#allocation3], 256, 256, 16
    $region17: #{patch_embedding_forward.1} parent=1 // pred_fallthru
      _
    // Predicated region
    $region18: #{patch_embedding_forward.1} parent=1 // pred_check
      _
    $region19: #{patch_embedding_forward.1} parent=1 // pred_check_branch
      %293 = sbr.rel (0) target = $region21
    $region20: #{patch_embedding_forward.1} parent=1 // pred_region
      %295 = dma.done [#allocation3], 1024
    $region21: #{patch_embedding_forward.1} parent=1 // pred_fallthru
      _
    %296 = vsyncpa [#allocation3], 1

</llo_original>
